<compile_context>
chip_gen: v7x
topology: tpu7x:2x2x1
jax: 0.10.0
libtpu: 0.0.40
codegen_flags: <defaults>
</compile_context>

<pallas_src>
import functools

import jax
import jax.numpy as jnp
from jax.experimental import pallas as pl
from jax.experimental.pallas import tpu as pltpu


def _round_up(v: int, m: int) -> int:
    return (v + m - 1) // m * m


# --------------------------------------------------------------------------- #
# Kernel
# --------------------------------------------------------------------------- #
def gru_cell_kernel(x_ref, h_ref, wx_ref, wh_ref, bxc_ref, bhn_ref, o_ref, *, hp: int):
    """One GRU-cell step for a (TB, .) batch tile, fully inside VMEM.

    x_ref  : (TB, Ip)      padded input tile (weight compute dtype, e.g. bf16)
    h_ref  : (TB, Hp)      padded previous hidden-state tile (native dtype)
    wx_ref : (Ip, 3*Hp)    x2h weights, gate-major along lanes (r | z | n)
    wh_ref : (Hp, 3*Hp)    h2h weights, gate-major along lanes (r | z | n)
    bxc_ref: (1, 3*Hp)     combined biases: [bxr+bhr | bxz+bhz | bxn]  (f32)
    bhn_ref: (1, Hp)       h2h bias of the n gate (stays inside r*(.))  (f32)
    o_ref  : (TB, Hp)      new hidden state tile
    """
    x = x_ref[...]                       # already in the weight compute dtype
    h = h_ref[...]                       # native dtype (used again in the blend)
    w_dtype = wx_ref.dtype

    # Two fused, lane-dense MXU matmuls (N = 3*Hp, multiple of 128), f32 accum.
    xg = jnp.dot(x, wx_ref[...], preferred_element_type=jnp.float32) + bxc_ref[...]
    hg = jnp.dot(h.astype(w_dtype), wh_ref[...], preferred_element_type=jnp.float32)

    # Static, 128-aligned lane slices per gate.
    x_r, x_z, x_n = xg[:, 0:hp], xg[:, hp:2 * hp], xg[:, 2 * hp:3 * hp]
    h_r, h_z, h_n = hg[:, 0:hp], hg[:, hp:2 * hp], hg[:, 2 * hp:3 * hp]

    # Elementwise gate math in f32 (sigmoid/tanh go to the EUP slot).
    r = jax.nn.sigmoid(x_r + h_r)
    z = jax.nn.sigmoid(x_z + h_z)
    n = jnp.tanh(x_n + r * (h_n + bhn_ref[...]))

    h_f32 = h.astype(jnp.float32)
    h_new = n + z * (h_f32 - n)          # == (1-z)*n + z*h, one fewer VPU op
    o_ref[...] = h_new.astype(o_ref.dtype)


# --------------------------------------------------------------------------- #
# One-time parameter packing (hoist this out of any recurrent loop).
# --------------------------------------------------------------------------- #
def pack_gru_params(w_x2h, b_x2h, w_h2h, b_h2h, param_dtype=jnp.bfloat16):
    """Pack PyTorch-layout GRUCell params into padded, gate-major tensors.

    w_x2h: (3H, I), b_x2h: (3H,), w_h2h: (3H, H), b_h2h: (3H,)  (nn.Linear layout)
    Returns a dict of arrays to be reused across every gru_cell_packed() call.
    """
    threeH, I = w_x2h.shape
    H = threeH // 3
    assert w_h2h.shape == (3 * H, H)
    Hp = _round_up(H, 128)
    Ip = _round_up(I, 128)

    def pack_w(w, in_dim, in_pad):
        # (3H, in) -> (3, in, H) -> pad -> concat gates along lanes -> (in_pad, 3*Hp)
        w3 = w.reshape(3, H, in_dim).transpose(0, 2, 1)
        w3 = jnp.pad(w3, ((0, 0), (0, in_pad - in_dim), (0, Hp - H)))
        return jnp.concatenate([w3[0], w3[1], w3[2]], axis=1).astype(param_dtype)

    wx_all = pack_w(w_x2h, I, Ip)      # (Ip, 3*Hp)
    wh_all = pack_w(w_h2h, H, Hp)      # (Hp, 3*Hp)

    # Pre-summed, lane-major biases (r/z fully summed; n keeps b_hn separate
    # because it must sit inside the r * (h_n + b_hn) term).  Biases stay f32.
    bx = b_x2h.reshape(3, H).astype(jnp.float32)
    bh = b_h2h.reshape(3, H).astype(jnp.float32)
    bxc = jnp.stack([bx[0] + bh[0], bx[1] + bh[1], bx[2]])     # (3, H)
    bxc = jnp.pad(bxc, ((0, 0), (0, Hp - H))).reshape(1, 3 * Hp)
    bhn = jnp.pad(bh[2], (0, Hp - H)).reshape(1, Hp)

    return {"wx": wx_all, "wh": wh_all, "bxc": bxc, "bhn": bhn}


# --------------------------------------------------------------------------- #
# Per-step call (weights already packed).
# --------------------------------------------------------------------------- #
def gru_cell_packed(x, h, params):
    wx, wh, bxc, bhn = params["wx"], params["wh"], params["bxc"], params["bhn"]
    B, I = x.shape
    Bh, H = h.shape
    Ip, threeHp = wx.shape
    Hp = wh.shape[0]
    assert Bh == B and threeHp == 3 * Hp and I <= Ip and H <= Hp

    # --- batch tiling -------------------------------------------------------
    Bp = _round_up(B, 8)
    TB = min(Bp, 256)                 # fill the 256-wide MXU M dim where possible
    Bp = _round_up(Bp, TB)
    if Bp == TB and TB % 16 == 0 and TB <= 128:
        TB //= 2                      # small batch: 2 tiles so v7x's 2nd TC works

    # Pad activations in their native dtype; cast x to the weight compute dtype
    # (it is only used in the matmul). h keeps its dtype for the f32 blend.
    xp = jnp.pad(x, ((0, Bp - B), (0, Ip - I))).astype(wx.dtype)
    h_in = jnp.pad(h, ((0, Bp - B), (0, Hp - H)))

    out_dtype = h.dtype
    kernel = functools.partial(gru_cell_kernel, hp=Hp)

    flops = 2 * Bp * (Ip + Hp) * 3 * Hp
    bytes_accessed = int(
        wx.size * wx.dtype.itemsize + wh.size * wh.dtype.itemsize
        + 4 * (bxc.size + bhn.size)
        + xp.size * xp.dtype.itemsize + h_in.size * h_in.dtype.itemsize
        + Bp * Hp * jnp.dtype(out_dtype).itemsize)
    cost = pl.CostEstimate(flops=flops, transcendentals=3 * Bp * Hp,
                           bytes_accessed=bytes_accessed)

    def run(weight_buffers: int):
        # Grid-invariant inputs: single-buffer them when supported.
        res_kw = {"pipeline_mode": pl.Buffered(1)} if weight_buffers == 1 else {}
        in_specs = [
            pl.BlockSpec((TB, Ip), lambda i: (i, 0)),                 # x tile
            pl.BlockSpec((TB, Hp), lambda i: (i, 0)),                 # h tile
            pl.BlockSpec((Ip, 3 * Hp), lambda i: (0, 0), **res_kw),   # Wx (resident)
            pl.BlockSpec((Hp, 3 * Hp), lambda i: (0, 0), **res_kw),   # Wh (resident)
            pl.BlockSpec((1, 3 * Hp), lambda i: (0, 0), **res_kw),    # combined biases
            pl.BlockSpec((1, Hp), lambda i: (0, 0), **res_kw),        # b_hn
        ]

        w_bytes = weight_buffers * (wx.size * wx.dtype.itemsize
                                    + wh.size * wh.dtype.itemsize
                                    + 4 * (bxc.size + bhn.size))
        act_bytes = 2 * TB * (Ip * xp.dtype.itemsize
                              + Hp * h_in.dtype.itemsize
                              + Hp * jnp.dtype(out_dtype).itemsize)
        scratch_bytes = 10 * TB * 3 * Hp * 4      # xg/hg/gate f32 temporaries
        vmem_bytes = int(w_bytes + act_bytes + scratch_bytes) + (4 << 20)
        vmem_bytes = max(min(vmem_bytes, 48 << 20), 16 << 20)  # <=48 MiB: v7x-safe

        return pl.pallas_call(
            kernel,
            out_shape=jax.ShapeDtypeStruct((Bp, Hp), out_dtype),
            grid=(Bp // TB,),
            in_specs=in_specs,
            out_specs=pl.BlockSpec((TB, Hp), lambda i: (i, 0)),
            compiler_params=pltpu.CompilerParams(
                dimension_semantics=("parallel",),
                vmem_limit_bytes=vmem_bytes),
            cost_estimate=cost,
        )(xp, h_in, wx, wh, bxc, bhn)

    try:
        out = run(1)          # single-buffered grid-invariant weights/biases
    except Exception:         # fallback if this build rejects Buffered(1)
        out = run(2)

    return out[:B, :H]


def gru_cell(x, h, w_x2h, b_x2h, w_h2h, b_h2h, param_dtype=jnp.bfloat16):
    """Convenience one-shot wrapper (packs then runs).  For recurrent use,
    call pack_gru_params() once and reuse gru_cell_packed() per step."""
    return gru_cell_packed(x, h, pack_gru_params(w_x2h, b_x2h, w_h2h, b_h2h,
                                                 param_dtype))


def gru_cell_ref(x, h, w_x2h, b_x2h, w_h2h, b_h2h):
    """Pure-JAX reference matching the PyTorch GRUCell module."""
    x2h = x @ w_x2h.T + b_x2h
    h2h = h @ w_h2h.T + b_h2h
    x_r, x_z, x_n = jnp.split(x2h, 3, axis=-1)
    h_r, h_z, h_n = jnp.split(h2h, 3, axis=-1)
    r = jax.nn.sigmoid(x_r + h_r)
    z = jax.nn.sigmoid(x_z + h_z)
    n = jnp.tanh(x_n + r * h_n)
    return (1.0 - z) * n + z * h


if __name__ == "__main__":
    B, I, H = 8, 16, 32  # batch, input_size, hidden_size

    key = jax.random.PRNGKey(0)
    kx, kh, kwx, kbx, kwh, kbh = jax.random.split(key, 6)

    # Deterministic parameter init in the PyTorch nn.Linear layout / range.
    bound_x = 1.0 / jnp.sqrt(jnp.float32(I))
    bound_h = 1.0 / jnp.sqrt(jnp.float32(H))
    w_x2h = jax.random.uniform(kwx, (3 * H, I), jnp.float32, -bound_x, bound_x)
    b_x2h = jax.random.uniform(kbx, (3 * H,), jnp.float32, -bound_x, bound_x)
    w_h2h = jax.random.uniform(kwh, (3 * H, H), jnp.float32, -bound_h, bound_h)
    b_h2h = jax.random.uniform(kbh, (3 * H,), jnp.float32, -bound_h, bound_h)

    x = jax.random.normal(kx, (B, I), jnp.float32)
    h = jax.random.normal(kh, (B, H), jnp.float32)

    h_ref = gru_cell_ref(x, h, w_x2h, b_x2h, w_h2h, b_h2h)

    # bf16-weight fast path: pack once, run kernel (looser tolerance for bf16 MXU).
    params_bf16 = pack_gru_params(w_x2h, b_x2h, w_h2h, b_h2h, jnp.bfloat16)
    h_bf16 = jax.block_until_ready(gru_cell_packed(x, h, params_bf16))
    assert h_bf16.shape == (B, H)
    assert jnp.allclose(h_bf16, h_ref, atol=5e-2), float(jnp.max(jnp.abs(h_bf16 - h_ref)))

    # f32-weight path: tight tolerance against the pure-JAX reference.
    params_f32 = pack_gru_params(w_x2h, b_x2h, w_h2h, b_h2h, jnp.float32)
    h_f32 = jax.block_until_ready(gru_cell_packed(x, h, params_f32))
    assert jnp.allclose(h_f32, h_ref, atol=1e-5, rtol=1e-5)

    # Non-aligned shapes: exercises lane/sublane padding and the multi-tile grid.
    B2, I2, H2 = 10, 20, 40
    k2 = jax.random.split(jax.random.PRNGKey(0), 6)
    w_x2 = jax.random.uniform(k2[0], (3 * H2, I2), jnp.float32, -0.2, 0.2)
    b_x2 = jax.random.uniform(k2[1], (3 * H2,), jnp.float32, -0.2, 0.2)
    w_h2 = jax.random.uniform(k2[2], (3 * H2, H2), jnp.float32, -0.2, 0.2)
    b_h2 = jax.random.uniform(k2[3], (3 * H2,), jnp.float32, -0.2, 0.2)
    x2 = jax.random.normal(k2[4], (B2, I2), jnp.float32)
    h2 = jax.random.normal(k2[5], (B2, H2), jnp.float32)
    out2 = jax.block_until_ready(gru_cell(x2, h2, w_x2, b_x2, w_h2, b_h2,
                                          param_dtype=jnp.float32))
    ref2 = gru_cell_ref(x2, h2, w_x2, b_x2, w_h2, b_h2)
    assert out2.shape == (B2, H2)
    assert jnp.allclose(out2, ref2, atol=1e-5, rtol=1e-5)

    print("KERNEL_OK")
</pallas_src>

<mosaic_0001>
module attributes {stable_mosaic.version = 11 : i64} {
  func.func @gru_cell_kernel(%arg0: i32, %arg1: memref<8x128xbf16, #tpu.memory_space<vmem>>, %arg2: memref<8x128xf32, #tpu.memory_space<vmem>>, %arg3: memref<128x384xbf16, #tpu.memory_space<vmem>>, %arg4: memref<128x384xbf16, #tpu.memory_space<vmem>>, %arg5: memref<1x384xf32, #tpu.memory_space<vmem>>, %arg6: memref<1x128xf32, #tpu.memory_space<vmem>>, %arg7: memref<8x128xf32, #tpu.memory_space<vmem>>) attributes {dimension_semantics = [#tpu.dimension_semantics<parallel>], iteration_bounds = array<i64: 1>, scalar_prefetch = 0 : i64, scratch_operands = 0 : i64, tpu.core_type = #tpu.core_type<tc>, window_params = [{transform_indices = @transform_0, window_bounds = array<i64: 8, 128>}, {transform_indices = @transform_1, window_bounds = array<i64: 8, 128>}, {pipeline_mode = #tpu.pipeline_mode<synchronous>, transform_indices = @transform_2, window_bounds = array<i64: 128, 384>}, {pipeline_mode = #tpu.pipeline_mode<synchronous>, transform_indices = @transform_3, window_bounds = array<i64: 128, 384>}, {pipeline_mode = #tpu.pipeline_mode<synchronous>, transform_indices = @transform_4, window_bounds = array<i64: 1, 384>}, {pipeline_mode = #tpu.pipeline_mode<synchronous>, transform_indices = @transform_5, window_bounds = array<i64: 1, 128>}, {transform_indices = @transform_6, window_bounds = array<i64: 8, 128>}]} {
    %c0 = arith.constant 0 : index
    %c0_0 = arith.constant 0 : index
    %0 = vector.load %arg1[%c0, %c0_0] : memref<8x128xbf16, #tpu.memory_space<vmem>>, vector<8x128xbf16>
    %c0_1 = arith.constant 0 : index
    %c0_2 = arith.constant 0 : index
    %1 = vector.load %arg2[%c0_1, %c0_2] : memref<8x128xf32, #tpu.memory_space<vmem>>, vector<8x128xf32>
    %c0_3 = arith.constant 0 : index
    %c0_4 = arith.constant 0 : index
    %2 = vector.load %arg3[%c0_3, %c0_4] : memref<128x384xbf16, #tpu.memory_space<vmem>>, vector<128x384xbf16>
    %cst = arith.constant dense<0.000000e+00> : vector<8x384xf32>
    %3 = tpu.matmul %0, %2, %cst {dimension_numbers = #tpu.dot_dimension_numbers<[1], [0], [0], [1], [0, 0, 1, 1], [], []>} : vector<8x128xbf16>, vector<128x384xbf16>, vector<8x384xf32> -> vector<8x384xf32>
    %c0_5 = arith.constant 0 : index
    %c0_6 = arith.constant 0 : index
    %4 = vector.load %arg5[%c0_5, %c0_6] : memref<1x384xf32, #tpu.memory_space<vmem>>, vector<1x384xf32>
    %5 = vector.broadcast %4 : vector<1x384xf32> to vector<8x384xf32>
    %6 = arith.addf %3, %5 : vector<8x384xf32>
    %7 = arith.truncf %1 : vector<8x128xf32> to vector<8x128xbf16>
    %c0_7 = arith.constant 0 : index
    %c0_8 = arith.constant 0 : index
    %8 = vector.load %arg4[%c0_7, %c0_8] : memref<128x384xbf16, #tpu.memory_space<vmem>>, vector<128x384xbf16>
    %cst_9 = arith.constant dense<0.000000e+00> : vector<8x384xf32>
    %9 = tpu.matmul %7, %8, %cst_9 {dimension_numbers = #tpu.dot_dimension_numbers<[1], [0], [0], [1], [0, 0, 1, 1], [], []>} : vector<8x128xbf16>, vector<128x384xbf16>, vector<8x384xf32> -> vector<8x384xf32>
    %10 = vector.extract_strided_slice %6 {offsets = [0, 0], sizes = [8, 128], strides = [1, 1]} : vector<8x384xf32> to vector<8x128xf32>
    %11 = vector.extract_strided_slice %6 {offsets = [0, 128], sizes = [8, 128], strides = [1, 1]} : vector<8x384xf32> to vector<8x128xf32>
    %12 = vector.extract_strided_slice %6 {offsets = [0, 256], sizes = [8, 128], strides = [1, 1]} : vector<8x384xf32> to vector<8x128xf32>
    %13 = vector.extract_strided_slice %9 {offsets = [0, 0], sizes = [8, 128], strides = [1, 1]} : vector<8x384xf32> to vector<8x128xf32>
    %14 = vector.extract_strided_slice %9 {offsets = [0, 128], sizes = [8, 128], strides = [1, 1]} : vector<8x384xf32> to vector<8x128xf32>
    %15 = vector.extract_strided_slice %9 {offsets = [0, 256], sizes = [8, 128], strides = [1, 1]} : vector<8x384xf32> to vector<8x128xf32>
    %16 = arith.addf %10, %13 : vector<8x128xf32>
    %17 = arith.negf %16 : vector<8x128xf32>
    %18 = math.exp %17 : vector<8x128xf32>
    %cst_10 = arith.constant 1.000000e+00 : f32
    %19 = vector.broadcast %cst_10 : f32 to vector<8x128xf32>
    %20 = arith.addf %19, %18 : vector<8x128xf32>
    %21 = arith.divf %19, %20 : vector<8x128xf32>
    %22 = arith.addf %11, %14 : vector<8x128xf32>
    %23 = arith.negf %22 : vector<8x128xf32>
    %24 = math.exp %23 : vector<8x128xf32>
    %cst_11 = arith.constant 1.000000e+00 : f32
    %25 = vector.broadcast %cst_11 : f32 to vector<8x128xf32>
    %26 = arith.addf %25, %24 : vector<8x128xf32>
    %27 = arith.divf %25, %26 : vector<8x128xf32>
    %c0_12 = arith.constant 0 : index
    %c0_13 = arith.constant 0 : index
    %28 = vector.load %arg6[%c0_12, %c0_13] : memref<1x128xf32, #tpu.memory_space<vmem>>, vector<1x128xf32>
    %29 = vector.broadcast %28 : vector<1x128xf32> to vector<8x128xf32>
    %30 = arith.addf %15, %29 : vector<8x128xf32>
    %31 = arith.mulf %21, %30 : vector<8x128xf32>
    %32 = arith.addf %12, %31 : vector<8x128xf32>
    %33 = math.tanh %32 : vector<8x128xf32>
    %34 = arith.subf %1, %33 : vector<8x128xf32>
    %35 = arith.mulf %27, %34 : vector<8x128xf32>
    %36 = arith.addf %33, %35 : vector<8x128xf32>
    %c0_14 = arith.constant 0 : index
    %c0_15 = arith.constant 0 : index
    %37 = vector.load %arg7[%c0_14, %c0_15] : memref<8x128xf32, #tpu.memory_space<vmem>>, vector<8x128xf32>
    tpu.vector_store %arg7[%c0_14, %c0_15], %36 {strides = array<i32>} : memref<8x128xf32, #tpu.memory_space<vmem>>, vector<8x128xf32>,
    return
  }
  func.func @transform_0(%arg0: i32) -> (i32, i32) {
    %c0_i32 = arith.constant 0 : i32
    %c0_i32_0 = arith.constant 0 : i32
    return %arg0, %c0_i32 : i32, i32
  }
  func.func @transform_1(%arg0: i32) -> (i32, i32) {
    %c0_i32 = arith.constant 0 : i32
    %c0_i32_0 = arith.constant 0 : i32
    return %arg0, %c0_i32 : i32, i32
  }
  func.func @transform_2(%arg0: i32) -> (i32, i32) {
    %c0_i32 = arith.constant 0 : i32
    %c0_i32_0 = arith.constant 0 : i32
    %c0_i32_1 = arith.constant 0 : i32
    return %c0_i32, %c0_i32_0 : i32, i32
  }
  func.func @transform_3(%arg0: i32) -> (i32, i32) {
    %c0_i32 = arith.constant 0 : i32
    %c0_i32_0 = arith.constant 0 : i32
    %c0_i32_1 = arith.constant 0 : i32
    return %c0_i32, %c0_i32_0 : i32, i32
  }
  func.func @transform_4(%arg0: i32) -> (i32, i32) {
    %c0_i32 = arith.constant 0 : i32
    %c0_i32_0 = arith.constant 0 : i32
    %c0_i32_1 = arith.constant 0 : i32
    return %c0_i32, %c0_i32_0 : i32, i32
  }
  func.func @transform_5(%arg0: i32) -> (i32, i32) {
    %c0_i32 = arith.constant 0 : i32
    %c0_i32_0 = arith.constant 0 : i32
    %c0_i32_1 = arith.constant 0 : i32
    return %c0_i32, %c0_i32_0 : i32, i32
  }
  func.func @transform_6(%arg0: i32) -> (i32, i32) {
    %c0_i32 = arith.constant 0 : i32
    %c0_i32_0 = arith.constant 0 : i32
    return %arg0, %c0_i32 : i32, i32
  }
}

module attributes {stable_mosaic.version = 11 : i64} {
  func.func @gru_cell_kernel(%arg0: i32, %arg1: memref<8x128xbf16, #tpu.memory_space<vmem>>, %arg2: memref<8x128xf32, #tpu.memory_space<vmem>>, %arg3: memref<128x384xbf16, #tpu.memory_space<vmem>>, %arg4: memref<128x384xbf16, #tpu.memory_space<vmem>>, %arg5: memref<1x384xf32, #tpu.memory_space<vmem>>, %arg6: memref<1x128xf32, #tpu.memory_space<vmem>>, %arg7: memref<8x128xf32, #tpu.memory_space<vmem>>) attributes {dimension_semantics = [#tpu.dimension_semantics<parallel>], iteration_bounds = array<i64: 1>, scalar_prefetch = 0 : i64, scratch_operands = 0 : i64, tpu.core_type = #tpu.core_type<tc>, window_params = [{transform_indices = @transform_0, window_bounds = array<i64: 8, 128>}, {transform_indices = @transform_1, window_bounds = array<i64: 8, 128>}, {pipeline_mode = #tpu.pipeline_mode<synchronous>, transform_indices = @transform_2, window_bounds = array<i64: 128, 384>}, {pipeline_mode = #tpu.pipeline_mode<synchronous>, transform_indices = @transform_3, window_bounds = array<i64: 128, 384>}, {pipeline_mode = #tpu.pipeline_mode<synchronous>, transform_indices = @transform_4, window_bounds = array<i64: 1, 384>}, {pipeline_mode = #tpu.pipeline_mode<synchronous>, transform_indices = @transform_5, window_bounds = array<i64: 1, 128>}, {transform_indices = @transform_6, window_bounds = array<i64: 8, 128>}]} {
    %c0 = arith.constant 0 : index
    %c0_0 = arith.constant 0 : index
    %0 = vector.load %arg1[%c0, %c0_0] : memref<8x128xbf16, #tpu.memory_space<vmem>>, vector<8x128xbf16>
    %c0_1 = arith.constant 0 : index
    %c0_2 = arith.constant 0 : index
    %1 = vector.load %arg2[%c0_1, %c0_2] : memref<8x128xf32, #tpu.memory_space<vmem>>, vector<8x128xf32>
    %c0_3 = arith.constant 0 : index
    %c0_4 = arith.constant 0 : index
    %2 = vector.load %arg3[%c0_3, %c0_4] : memref<128x384xbf16, #tpu.memory_space<vmem>>, vector<128x384xbf16>
    %cst = arith.constant dense<0.000000e+00> : vector<8x384xf32>
    %3 = tpu.matmul %0, %2, %cst {dimension_numbers = #tpu.dot_dimension_numbers<[1], [0], [0], [1], [0, 0, 1, 1], [], []>} : vector<8x128xbf16>, vector<128x384xbf16>, vector<8x384xf32> -> vector<8x384xf32>
    %c0_5 = arith.constant 0 : index
    %c0_6 = arith.constant 0 : index
    %4 = vector.load %arg5[%c0_5, %c0_6] : memref<1x384xf32, #tpu.memory_space<vmem>>, vector<1x384xf32>
    %5 = vector.broadcast %4 : vector<1x384xf32> to vector<8x384xf32>
    %6 = arith.addf %3, %5 : vector<8x384xf32>
    %7 = arith.truncf %1 : vector<8x128xf32> to vector<8x128xbf16>
    %c0_7 = arith.constant 0 : index
    %c0_8 = arith.constant 0 : index
    %8 = vector.load %arg4[%c0_7, %c0_8] : memref<128x384xbf16, #tpu.memory_space<vmem>>, vector<128x384xbf16>
    %cst_9 = arith.constant dense<0.000000e+00> : vector<8x384xf32>
    %9 = tpu.matmul %7, %8, %cst_9 {dimension_numbers = #tpu.dot_dimension_numbers<[1], [0], [0], [1], [0, 0, 1, 1], [], []>} : vector<8x128xbf16>, vector<128x384xbf16>, vector<8x384xf32> -> vector<8x384xf32>
    %10 = vector.extract_strided_slice %6 {offsets = [0, 0], sizes = [8, 128], strides = [1, 1]} : vector<8x384xf32> to vector<8x128xf32>
    %11 = vector.extract_strided_slice %6 {offsets = [0, 128], sizes = [8, 128], strides = [1, 1]} : vector<8x384xf32> to vector<8x128xf32>
    %12 = vector.extract_strided_slice %6 {offsets = [0, 256], sizes = [8, 128], strides = [1, 1]} : vector<8x384xf32> to vector<8x128xf32>
    %13 = vector.extract_strided_slice %9 {offsets = [0, 0], sizes = [8, 128], strides = [1, 1]} : vector<8x384xf32> to vector<8x128xf32>
    %14 = vector.extract_strided_slice %9 {offsets = [0, 128], sizes = [8, 128], strides = [1, 1]} : vector<8x384xf32> to vector<8x128xf32>
    %15 = vector.extract_strided_slice %9 {offsets = [0, 256], sizes = [8, 128], strides = [1, 1]} : vector<8x384xf32> to vector<8x128xf32>
    %16 = arith.addf %10, %13 : vector<8x128xf32>
    %17 = arith.negf %16 : vector<8x128xf32>
    %18 = math.exp %17 : vector<8x128xf32>
    %cst_10 = arith.constant 1.000000e+00 : f32
    %19 = vector.broadcast %cst_10 : f32 to vector<8x128xf32>
    %20 = arith.addf %19, %18 : vector<8x128xf32>
    %21 = arith.divf %19, %20 : vector<8x128xf32>
    %22 = arith.addf %11, %14 : vector<8x128xf32>
    %23 = arith.negf %22 : vector<8x128xf32>
    %24 = math.exp %23 : vector<8x128xf32>
    %cst_11 = arith.constant 1.000000e+00 : f32
    %25 = vector.broadcast %cst_11 : f32 to vector<8x128xf32>
    %26 = arith.addf %25, %24 : vector<8x128xf32>
    %27 = arith.divf %25, %26 : vector<8x128xf32>
    %c0_12 = arith.constant 0 : index
    %c0_13 = arith.constant 0 : index
    %28 = vector.load %arg6[%c0_12, %c0_13] : memref<1x128xf32, #tpu.memory_space<vmem>>, vector<1x128xf32>
    %29 = vector.broadcast %28 : vector<1x128xf32> to vector<8x128xf32>
    %30 = arith.addf %15, %29 : vector<8x128xf32>
    %31 = arith.mulf %21, %30 : vector<8x128xf32>
    %32 = arith.addf %12, %31 : vector<8x128xf32>
    %33 = math.tanh %32 : vector<8x128xf32>
    %34 = arith.subf %1, %33 : vector<8x128xf32>
    %35 = arith.mulf %27, %34 : vector<8x128xf32>
    %36 = arith.addf %33, %35 : vector<8x128xf32>
    %c0_14 = arith.constant 0 : index
    %c0_15 = arith.constant 0 : index
    %37 = vector.load %arg7[%c0_14, %c0_15] : memref<8x128xf32, #tpu.memory_space<vmem>>, vector<8x128xf32>
    tpu.vector_store %arg7[%c0_14, %c0_15], %36 {strides = array<i32>} : memref<8x128xf32, #tpu.memory_space<vmem>>, vector<8x128xf32>,
    return
  }
  func.func @transform_0(%arg0: i32) -> (i32, i32) {
    %c0_i32 = arith.constant 0 : i32
    %c0_i32_0 = arith.constant 0 : i32
    return %arg0, %c0_i32 : i32, i32
  }
  func.func @transform_1(%arg0: i32) -> (i32, i32) {
    %c0_i32 = arith.constant 0 : i32
    %c0_i32_0 = arith.constant 0 : i32
    return %arg0, %c0_i32 : i32, i32
  }
  func.func @transform_2(%arg0: i32) -> (i32, i32) {
    %c0_i32 = arith.constant 0 : i32
    %c0_i32_0 = arith.constant 0 : i32
    %c0_i32_1 = arith.constant 0 : i32
    return %c0_i32, %c0_i32_0 : i32, i32
  }
  func.func @transform_3(%arg0: i32) -> (i32, i32) {
    %c0_i32 = arith.constant 0 : i32
    %c0_i32_0 = arith.constant 0 : i32
    %c0_i32_1 = arith.constant 0 : i32
    return %c0_i32, %c0_i32_0 : i32, i32
  }
  func.func @transform_4(%arg0: i32) -> (i32, i32) {
    %c0_i32 = arith.constant 0 : i32
    %c0_i32_0 = arith.constant 0 : i32
    %c0_i32_1 = arith.constant 0 : i32
    return %c0_i32, %c0_i32_0 : i32, i32
  }
  func.func @transform_5(%arg0: i32) -> (i32, i32) {
    %c0_i32 = arith.constant 0 : i32
    %c0_i32_0 = arith.constant 0 : i32
    %c0_i32_1 = arith.constant 0 : i32
    return %c0_i32, %c0_i32_0 : i32, i32
  }
  func.func @transform_6(%arg0: i32) -> (i32, i32) {
    %c0_i32 = arith.constant 0 : i32
    %c0_i32_0 = arith.constant 0 : i32
    return %arg0, %c0_i32 : i32, i32
  }
}

</mosaic_0001>

<llo_original>
// kernel: tpu_custom_call.1
$region0: #{tpu_custom_call.1}
  #allocation0 [shape = 'u32[]', space=smem, size = 0x4, offset = 0x4, fixed_abs, tag = 'smem constant byte address 0x4 - core index']
  #allocation1 [shape = 'u32[144,128]{1,0:T(1,128)}', space=vmem, size = 0x12000, scoped, tag = 'internal scratch']
  %s0 = inlined_call_operand.hbm [shape: bf16[8,128], index: 0, kind: input, shape index: {}]
  %s1 = inlined_call_operand.hbm [shape: f32[8,128], index: 1, kind: input, shape index: {}]
  %s2 = inlined_call_operand.hbm [shape: bf16[128,384], index: 2, kind: input, shape index: {}]
  %s3 = inlined_call_operand.hbm [shape: bf16[128,384], index: 3, kind: input, shape index: {}]
  %s4 = inlined_call_operand.vmem [shape: f32[1,384], index: 4, kind: input, shape index: {}]
  %s5 = inlined_call_operand.vmem [shape: f32[1,128], index: 5, kind: input, shape index: {}]
  %s6 = inlined_call_operand.hbm [shape: f32[8,128], index: 6, kind: output, shape index: {}]
  %s7 = sld [smem:[#allocation0]]
  $region50: #{tpu_custom_call.1} parent=0
    _
  %s9 = ssub.s32 1, %s7
  %s10 = scalar_select 0, %s9, %s7
  $region1: #{tpu_custom_call.1} parent=0
    #allocation2 [shape = 'u8[2048]{0}', space=vmem, size = 0x800, scoped, tag = 'input window, operand 0, single buffered']
    #allocation3 [shape = 's32[1]{0}', space=sflag, size = 0x4, scoped, tag = 'scoped memory for tpu_custom_call.1']
    #allocation4 [shape = 's32[1]{0}', space=sflag, size = 0x4, scoped, tag = 'scoped memory for tpu_custom_call.1']
    #allocation5 [shape = 'u8[4096]{0}', space=vmem, size = 0x1000, scoped, tag = 'input window, operand 1, single buffered']
    #allocation6 [shape = 's32[1]{0}', space=sflag, size = 0x4, scoped, tag = 'scoped memory for tpu_custom_call.1']
    #allocation7 [shape = 'u8[98304]{0}', space=vmem, size = 0x18000, scoped, tag = 'input window, operand 2, single buffered']
    #allocation8 [shape = 'u8[98304]{0}', space=vmem, size = 0x18000, scoped, tag = 'input window, operand 3, single buffered']
    #allocation9 [shape = 's32[1]{0}', space=sflag, size = 0x4, scoped, tag = 'scoped memory for tpu_custom_call.1']
    #allocation10 [shape = 'u8[4096]{0}', space=vmem, size = 0x1000, scoped, tag = 'output window, operand 0, single buffered']
    %11 = vsyncpa [#allocation3], 0
    %12 = vsyncpa [#allocation6], 0
    %13 = vsyncpa [#allocation9], 0
    %14 = vsyncpa [#allocation4], 0
    // Predicated region
    $region2: #{tpu_custom_call.1} parent=1 // pred_check
      _
    $region3: #{tpu_custom_call.1} parent=1 // pred_check_branch
      %16 = sbr.rel (0) target = $region5
    $region4: #{tpu_custom_call.1} parent=1 // pred_region
      %s18 = ssub.s32 64, 64
      %19 = vsyncadd [#allocation3], %s18
      %s21 = sshll.u32 [#allocation2], 4
      %s22 = int_to_ptr.vmem [resolvable:$true] %s21
      %24 = dma.hbm_to_vmem [thread:$0]  %s0, 64, %s22, [#allocation3]
    $region5: #{tpu_custom_call.1} parent=1 // pred_fallthru
      _
    // Predicated region
    $region6: #{tpu_custom_call.1} parent=1 // pred_check
      _
    $region7: #{tpu_custom_call.1} parent=1 // pred_check_branch
      %26 = sbr.rel (0) target = $region9
    $region8: #{tpu_custom_call.1} parent=1 // pred_region
      %s28 = ssub.s32 128, 128
      %29 = vsyncadd [#allocation6], %s28
      %s31 = sshll.u32 [#allocation5], 4
      %s32 = int_to_ptr.vmem [resolvable:$true] %s31
      %34 = dma.hbm_to_vmem [thread:$0]  %s1, 128, %s32, [#allocation6]
    $region9: #{tpu_custom_call.1} parent=1 // pred_fallthru
      _
    // Predicated region
    $region10: #{tpu_custom_call.1} parent=1 // pred_check
      _
    $region11: #{tpu_custom_call.1} parent=1 // pred_check_branch
      %36 = sbr.rel (0) target = $region13
    $region12: #{tpu_custom_call.1} parent=1 // pred_region
      %s38 = ssub.s32 3072, 3072
      %39 = vsyncadd [#allocation6], %s38
      %s40 = sshll.u32 [#allocation7], 4
      %s41 = int_to_ptr.vmem [resolvable:$true] %s40
      %46 = dma.hbm_to_vmem [thread:$0]  %s2, 3072, %s41, [#allocation6], 192, 192, 12
    $region13: #{tpu_custom_call.1} parent=1 // pred_fallthru
      _
    // Predicated region
    $region14: #{tpu_custom_call.1} parent=1 // pred_check
      _
    $region15: #{tpu_custom_call.1} parent=1 // pred_check_branch
      %48 = sbr.rel (0) target = $region17
    $region16: #{tpu_custom_call.1} parent=1 // pred_region
      %s50 = ssub.s32 3072, 3072
      %51 = vsyncadd [#allocation9], %s50
      %s52 = sshll.u32 [#allocation8], 4
      %s53 = int_to_ptr.vmem [resolvable:$true] %s52
      %58 = dma.hbm_to_vmem [thread:$0]  %s3, 3072, %s53, [#allocation9], 192, 192, 12
    $region17: #{tpu_custom_call.1} parent=1 // pred_fallthru
      _
    // Predicated region
    $region18: #{tpu_custom_call.1} parent=1 // pred_check
      _
    $region19: #{tpu_custom_call.1} parent=1 // pred_check_branch
      %60 = sbr.rel (0) target = $region21
    $region20: #{tpu_custom_call.1} parent=1 // pred_region
      _
    $region21: #{tpu_custom_call.1} parent=1 // pred_fallthru
      _
    // Predicated region
    $region22: #{tpu_custom_call.1} parent=1 // pred_check
      _
    $region23: #{tpu_custom_call.1} parent=1 // pred_check_branch
      %62 = sbr.rel (0) target = $region25
    $region24: #{tpu_custom_call.1} parent=1 // pred_region
      _
    $region25: #{tpu_custom_call.1} parent=1 // pred_fallthru
      _
    // Predicated region
    $region26: #{tpu_custom_call.1} parent=1 // pred_check
      _
    $region27: #{tpu_custom_call.1} parent=1 // pred_check_branch
      %64 = sbr.rel (0) target = $region29
    $region28: #{tpu_custom_call.1} parent=1 // pred_region
      %65 = dma.done [#allocation3], 64
    $region29: #{tpu_custom_call.1} parent=1 // pred_fallthru
      _
    // Predicated region
    $region30: #{tpu_custom_call.1} parent=1 // pred_check
      _
    $region31: #{tpu_custom_call.1} parent=1 // pred_check_branch
      %67 = sbr.rel (0) target = $region33
    $region32: #{tpu_custom_call.1} parent=1 // pred_region
      %68 = dma.done [#allocation6], 128
    $region33: #{tpu_custom_call.1} parent=1 // pred_fallthru
      _
    // Predicated region
    $region34: #{tpu_custom_call.1} parent=1 // pred_check
      _
    $region35: #{tpu_custom_call.1} parent=1 // pred_check_branch
      %70 = sbr.rel (0) target = $region37
    $region36: #{tpu_custom_call.1} parent=1 // pred_region
      %71 = dma.done [#allocation6], 3072
    $region37: #{tpu_custom_call.1} parent=1 // pred_fallthru
      _
    // Predicated region
    $region38: #{tpu_custom_call.1} parent=1 // pred_check
      _
    $region39: #{tpu_custom_call.1} parent=1 // pred_check_branch
      %73 = sbr.rel (0) target = $region41
    $region40: #{tpu_custom_call.1} parent=1 // pred_region
      %74 = dma.done [#allocation9], 3072
    $region41: #{tpu_custom_call.1} parent=1 // pred_fallthru
      _
    %v76 = vld [vmem:[#allocation2] sm:$0xf]
    %v77 = vld [vmem:[#allocation5] sm:$0xff]
    %v78 = vld [vmem:[#allocation7] sm:$0xff]
    %v79 = vld [vmem:[#allocation7 + $0x8] sm:$0xf]
    %v80 = vld [vmem:[#allocation7 + $0xc] sm:$0xff]
    %v81 = vld [vmem:[#allocation7 + $0x14] sm:$0xf]
    %v82 = vld [vmem:[#allocation7 + $0x18] sm:$0xff]
    %v83 = vld [vmem:[#allocation7 + $0x20] sm:$0xf]
    %v84 = vld [vmem:[#allocation7 + $0x24] sm:$0xff]
    %v85 = vld [vmem:[#allocation7 + $0x2c] sm:$0xf]
    %v86 = vld [vmem:[#allocation7 + $0x30] sm:$0xff]
    %v87 = vld [vmem:[#allocation7 + $0x38] sm:$0xf]
    %v88 = vld [vmem:[#allocation7 + $0x3c] sm:$0xff]
    %v89 = vld [vmem:[#allocation7 + $0x44] sm:$0xf]
    %v90 = vld [vmem:[#allocation7 + $0x48] sm:$0xff]
    %v91 = vld [vmem:[#allocation7 + $0x50] sm:$0xf]
    %v92 = vld [vmem:[#allocation7 + $0x54] sm:$0xff]
    %v93 = vld [vmem:[#allocation7 + $0x5c] sm:$0xf]
    %v94 = vld [vmem:[#allocation7 + $0x60] sm:$0xff]
    %v95 = vld [vmem:[#allocation7 + $0x68] sm:$0xf]
    %v96 = vld [vmem:[#allocation7 + $0x6c] sm:$0xff]
    %v97 = vld [vmem:[#allocation7 + $0x74] sm:$0xf]
    %v98 = vld [vmem:[#allocation7 + $0x78] sm:$0xff]
    %v99 = vld [vmem:[#allocation7 + $0x80] sm:$0xf]
    %v100 = vld [vmem:[#allocation7 + $0x84] sm:$0xff]
    %v101 = vld [vmem:[#allocation7 + $0x8c] sm:$0xf]
    %v102 = vld [vmem:[#allocation7 + $0x90] sm:$0xff]
    %v103 = vld [vmem:[#allocation7 + $0x98] sm:$0xf]
    %v104 = vld [vmem:[#allocation7 + $0x9c] sm:$0xff]
    %v105 = vld [vmem:[#allocation7 + $0xa4] sm:$0xf]
    %v106 = vld [vmem:[#allocation7 + $0xa8] sm:$0xff]
    %v107 = vld [vmem:[#allocation7 + $0xb0] sm:$0xf]
    %v108 = vld [vmem:[#allocation7 + $0xb4] sm:$0xff]
    %v109 = vld [vmem:[#allocation7 + $0xbc] sm:$0xf]
    %v110 = vld [vmem:[%s4] sm:$0x7]
    %v112 = vlaneseq
    %v113 = vshrl.u32 %v112, 7
    %v114 = vsub.s32 0, %v113
    %v115 = vrot.slane %v110, %v114
    %v116 = vlaneseq
    %v117 = vshrl.u32 %v116, 7
    %v118 = vsub.s32 1, %v117
    %v119 = vrot.slane %v110, %v118
    %v120 = vlaneseq
    %v121 = vshrl.u32 %v120, 7
    %v122 = vsub.s32 2, %v121
    %v123 = vrot.slane %v110, %v122
    %v159 = vunpack.c.l.b16 %v78
    %v160 = vunpack.c.h.b16 %v78
    %v161 = vunpack.c.l.b16 %v79
    %v162 = vunpack.c.l.b16 %v80
    %v163 = vunpack.c.h.b16 %v80
    %v164 = vunpack.c.l.b16 %v81
    %v165 = vunpack.c.l.b16 %v82
    %v166 = vunpack.c.h.b16 %v82
    %v167 = vunpack.c.l.b16 %v83
    %v168 = vunpack.c.l.b16 %v84
    %v169 = vunpack.c.h.b16 %v84
    %v170 = vunpack.c.l.b16 %v85
    %v171 = vunpack.c.l.b16 %v86
    %v172 = vunpack.c.h.b16 %v86
    %v173 = vunpack.c.l.b16 %v87
    %v174 = vunpack.c.l.b16 %v88
    %v175 = vunpack.c.h.b16 %v88
    %v176 = vunpack.c.l.b16 %v89
    %v177 = vunpack.c.l.b16 %v90
    %v178 = vunpack.c.h.b16 %v90
    %v179 = vunpack.c.l.b16 %v91
    %v180 = vunpack.c.l.b16 %v92
    %v181 = vunpack.c.h.b16 %v92
    %v182 = vunpack.c.l.b16 %v93
    %v183 = vunpack.c.l.b16 %v94
    %v184 = vunpack.c.h.b16 %v94
    %v185 = vunpack.c.l.b16 %v95
    %v186 = vunpack.c.l.b16 %v96
    %v187 = vunpack.c.h.b16 %v96
    %v188 = vunpack.c.l.b16 %v97
    %v189 = vunpack.c.l.b16 %v98
    %v190 = vunpack.c.h.b16 %v98
    %v191 = vunpack.c.l.b16 %v99
    %v192 = vunpack.c.l.b16 %v100
    %v193 = vunpack.c.h.b16 %v100
    %v194 = vunpack.c.l.b16 %v101
    %v195 = vunpack.c.l.b16 %v102
    %v196 = vunpack.c.h.b16 %v102
    %v197 = vunpack.c.l.b16 %v103
    %v198 = vunpack.c.l.b16 %v104
    %v199 = vunpack.c.h.b16 %v104
    %v200 = vunpack.c.l.b16 %v105
    %v201 = vunpack.c.l.b16 %v106
    %v202 = vunpack.c.h.b16 %v106
    %v203 = vunpack.c.l.b16 %v107
    %v204 = vunpack.c.l.b16 %v108
    %v205 = vunpack.c.h.b16 %v108
    %v206 = vunpack.c.l.b16 %v109
    %v207 = vpack.c.b16 %v162, %v159
    %v208 = vpack.c.b16 %v163, %v160
    %v209 = vpack.c.b16 %v164, %v161
    %v210 = vpack.c.b16 %v168, %v165
    %v211 = vpack.c.b16 %v169, %v166
    %v212 = vpack.c.b16 %v170, %v167
    %v213 = vpack.c.b16 %v174, %v171
    %v214 = vpack.c.b16 %v175, %v172
    %v215 = vpack.c.b16 %v176, %v173
    %v216 = vpack.c.b16 %v180, %v177
    %v217 = vpack.c.b16 %v181, %v178
    %v218 = vpack.c.b16 %v182, %v179
    %v219 = vpack.c.b16 %v186, %v183
    %v220 = vpack.c.b16 %v187, %v184
    %v221 = vpack.c.b16 %v188, %v185
    %v222 = vpack.c.b16 %v192, %v189
    %v223 = vpack.c.b16 %v193, %v190
    %v224 = vpack.c.b16 %v194, %v191
    %v225 = vpack.c.b16 %v198, %v195
    %v226 = vpack.c.b16 %v199, %v196
    %v227 = vpack.c.b16 %v200, %v197
    %v228 = vpack.c.b16 %v204, %v201
    %v229 = vpack.c.b16 %v205, %v202
    %v230 = vpack.c.b16 %v206, %v203
    %255 = vmatprep.subr.bf16.mxu0 %v208
    %256 = vmatpush1.bf16.msra.mxu0 %v207
    %257 = vmatprep.subr.bf16.mxu0 %v211
    %258 = vmatpush1.bf16.msra.mxu0 %v210
    %259 = vmatprep.subr.bf16.mxu0 %v214
    %260 = vmatpush1.bf16.msra.mxu0 %v213
    %261 = vmatprep.subr.bf16.mxu0 %v217
    %262 = vmatpush1.bf16.msra.mxu0 %v216
    %263 = vmatprep.subr.bf16.mxu0 %v220
    %264 = vmatpush1.bf16.msra.mxu0 %v219
    %265 = vmatprep.subr.bf16.mxu0 %v223
    %266 = vmatpush1.bf16.msra.mxu0 %v222
    %267 = vmatprep.subr.bf16.mxu0 %v226
    %268 = vmatpush1.bf16.msra.mxu0 %v225
    %269 = vmatprep.subr.bf16.mxu0 %v229
    %270 = vmatpush1.bf16.msra.mxu0 %v228
    %271 = vmatprep.subr.bf16.mxu0 0
    %272 = vmatpush1.bf16.msra.mxu0 0
    %273 = vmatprep.subr.bf16.mxu0 0
    %274 = vmatpush1.bf16.msra.mxu0 0
    %275 = vmatprep.subr.bf16.mxu0 0
    %276 = vmatpush1.bf16.msra.mxu0 0
    %277 = vmatprep.subr.bf16.mxu0 0
    %278 = vmatpush1.bf16.msra.mxu0 0
    %279 = vmatprep.subr.bf16.mxu0 0
    %280 = vmatpush1.bf16.msra.mxu0 0
    %281 = vmatprep.subr.bf16.mxu0 0
    %282 = vmatpush1.bf16.msra.mxu0 0
    %283 = vmatprep.subr.bf16.mxu0 0
    %284 = vmatpush1.bf16.msra.mxu0 0
    %285 = vmatprep.subr.bf16.mxu0 0
    %286 = vmatpush1.bf16.msra.mxu0 0
    %287 = vmatprep.mubr.bf16.mxu0 0
    %288 = vmatmul.mubr.bf16.gmra.mrb[0].mxu0 %v76
    %v289 = vpop.f32.mrb[0].mxu0
    %v290 = vadd.f32 %v115, %v289
    %v291 = vpop.f32.mrb[0].mxu0
    %v292 = vadd.f32 %v119, %v291
    %v293 = vpop.f32.mrb[0].mxu0
    %v294 = vpop.f32.mrb[0].mxu0
    %295 = vdwg.mxu0
    %296 = vmatprep.subr.bf16.mxu0 0
    %297 = vmatpush1.bf16.msra.mxu0 %v209
    %298 = vmatprep.subr.bf16.mxu0 0
    %299 = vmatpush1.bf16.msra.mxu0 %v212
    %300 = vmatprep.subr.bf16.mxu0 0
    %301 = vmatpush1.bf16.msra.mxu0 %v215
    %302 = vmatprep.subr.bf16.mxu0 0
    %303 = vmatpush1.bf16.msra.mxu0 %v218
    %304 = vmatprep.subr.bf16.mxu0 0
    %305 = vmatpush1.bf16.msra.mxu0 %v221
    %306 = vmatprep.subr.bf16.mxu0 0
    %307 = vmatpush1.bf16.msra.mxu0 %v224
    %308 = vmatprep.subr.bf16.mxu0 0
    %309 = vmatpush1.bf16.msra.mxu0 %v227
    %310 = vmatprep.subr.bf16.mxu0 0
    %311 = vmatpush1.bf16.msra.mxu0 %v230
    %312 = vmatprep.subr.bf16.mxu0 0
    %313 = vmatpush1.bf16.msra.mxu0 0
    %314 = vmatprep.subr.bf16.mxu0 0
    %315 = vmatpush1.bf16.msra.mxu0 0
    %316 = vmatprep.subr.bf16.mxu0 0
    %317 = vmatpush1.bf16.msra.mxu0 0
    %318 = vmatprep.subr.bf16.mxu0 0
    %319 = vmatpush1.bf16.msra.mxu0 0
    %320 = vmatprep.subr.bf16.mxu0 0
    %321 = vmatpush1.bf16.msra.mxu0 0
    %322 = vmatprep.subr.bf16.mxu0 0
    %323 = vmatpush1.bf16.msra.mxu0 0
    %324 = vmatprep.subr.bf16.mxu0 0
    %325 = vmatpush1.bf16.msra.mxu0 0
    %326 = vmatprep.subr.bf16.mxu0 0
    %327 = vmatpush1.bf16.msra.mxu0 0
    %328 = vmatprep.mubr.bf16.mxu0 0
    %329 = vmatmul.mubr.bf16.gmra.mrb[0].mxu0 %v76
    %v330 = vpop.f32.mrb[0].mxu0
    %v331 = vadd.f32 %v123, %v330
    %v332 = vpop.f32.mrb[0].mxu0
    %v333 = vpop.f32.mrb[0].mxu0
    %v334 = vpop.f32.mrb[0].mxu0
    %335 = vdwg.mxu0
    %v336 = vpack.c.bf16 %v77, %v77
    %v337 = vld [vmem:[#allocation8] sm:$0xff]
    %v338 = vld [vmem:[#allocation8 + $0x8] sm:$0xf]
    %v339 = vld [vmem:[#allocation8 + $0xc] sm:$0xff]
    %v340 = vld [vmem:[#allocation8 + $0x14] sm:$0xf]
    %v341 = vld [vmem:[#allocation8 + $0x18] sm:$0xff]
    %v342 = vld [vmem:[#allocation8 + $0x20] sm:$0xf]
    %v343 = vld [vmem:[#allocation8 + $0x24] sm:$0xff]
    %v344 = vld [vmem:[#allocation8 + $0x2c] sm:$0xf]
    %v345 = vld [vmem:[#allocation8 + $0x30] sm:$0xff]
    %v346 = vld [vmem:[#allocation8 + $0x38] sm:$0xf]
    %v347 = vld [vmem:[#allocation8 + $0x3c] sm:$0xff]
    %v348 = vld [vmem:[#allocation8 + $0x44] sm:$0xf]
    %v349 = vld [vmem:[#allocation8 + $0x48] sm:$0xff]
    %v350 = vld [vmem:[#allocation8 + $0x50] sm:$0xf]
    %v351 = vld [vmem:[#allocation8 + $0x54] sm:$0xff]
    %v352 = vld [vmem:[#allocation8 + $0x5c] sm:$0xf]
    %v353 = vld [vmem:[#allocation8 + $0x60] sm:$0xff]
    %v354 = vld [vmem:[#allocation8 + $0x68] sm:$0xf]
    %v355 = vld [vmem:[#allocation8 + $0x6c] sm:$0xff]
    %v356 = vld [vmem:[#allocation8 + $0x74] sm:$0xf]
    %v357 = vld [vmem:[#allocation8 + $0x78] sm:$0xff]
    %v358 = vld [vmem:[#allocation8 + $0x80] sm:$0xf]
    %v359 = vld [vmem:[#allocation8 + $0x84] sm:$0xff]
    %v360 = vld [vmem:[#allocation8 + $0x8c] sm:$0xf]
    %v361 = vld [vmem:[#allocation8 + $0x90] sm:$0xff]
    %v362 = vld [vmem:[#allocation8 + $0x98] sm:$0xf]
    %v363 = vld [vmem:[#allocation8 + $0x9c] sm:$0xff]
    %v364 = vld [vmem:[#allocation8 + $0xa4] sm:$0xf]
    %v365 = vld [vmem:[#allocation8 + $0xa8] sm:$0xff]
    %v366 = vld [vmem:[#allocation8 + $0xb0] sm:$0xf]
    %v367 = vld [vmem:[#allocation8 + $0xb4] sm:$0xff]
    %v368 = vld [vmem:[#allocation8 + $0xbc] sm:$0xf]
    %v401 = vunpack.c.l.b16 %v337
    %v402 = vunpack.c.h.b16 %v337
    %v403 = vunpack.c.l.b16 %v338
    %v404 = vunpack.c.l.b16 %v339
    %v405 = vunpack.c.h.b16 %v339
    %v406 = vunpack.c.l.b16 %v340
    %v407 = vunpack.c.l.b16 %v341
    %v408 = vunpack.c.h.b16 %v341
    %v409 = vunpack.c.l.b16 %v342
    %v410 = vunpack.c.l.b16 %v343
    %v411 = vunpack.c.h.b16 %v343
    %v412 = vunpack.c.l.b16 %v344
    %v413 = vunpack.c.l.b16 %v345
    %v414 = vunpack.c.h.b16 %v345
    %v415 = vunpack.c.l.b16 %v346
    %v416 = vunpack.c.l.b16 %v347
    %v417 = vunpack.c.h.b16 %v347
    %v418 = vunpack.c.l.b16 %v348
    %v419 = vunpack.c.l.b16 %v349
    %v420 = vunpack.c.h.b16 %v349
    %v421 = vunpack.c.l.b16 %v350
    %v422 = vunpack.c.l.b16 %v351
    %v423 = vunpack.c.h.b16 %v351
    %v424 = vunpack.c.l.b16 %v352
    %v425 = vunpack.c.l.b16 %v353
    %v426 = vunpack.c.h.b16 %v353
    %v427 = vunpack.c.l.b16 %v354
    %v428 = vunpack.c.l.b16 %v355
    %v429 = vunpack.c.h.b16 %v355
    %v430 = vunpack.c.l.b16 %v356
    %v431 = vunpack.c.l.b16 %v357
    %v432 = vunpack.c.h.b16 %v357
    %v433 = vunpack.c.l.b16 %v358
    %v434 = vunpack.c.l.b16 %v359
    %v435 = vunpack.c.h.b16 %v359
    %v436 = vunpack.c.l.b16 %v360
    %v437 = vunpack.c.l.b16 %v361
    %v438 = vunpack.c.h.b16 %v361
    %v439 = vunpack.c.l.b16 %v362
    %v440 = vunpack.c.l.b16 %v363
    %v441 = vunpack.c.h.b16 %v363
    %v442 = vunpack.c.l.b16 %v364
    %v443 = vunpack.c.l.b16 %v365
    %v444 = vunpack.c.h.b16 %v365
    %v445 = vunpack.c.l.b16 %v366
    %v446 = vunpack.c.l.b16 %v367
    %v447 = vunpack.c.h.b16 %v367
    %v448 = vunpack.c.l.b16 %v368
    %v449 = vpack.c.b16 %v404, %v401
    %v450 = vpack.c.b16 %v405, %v402
    %v451 = vpack.c.b16 %v406, %v403
    %v452 = vpack.c.b16 %v410, %v407
    %v453 = vpack.c.b16 %v411, %v408
    %v454 = vpack.c.b16 %v412, %v409
    %v455 = vpack.c.b16 %v416, %v413
    %v456 = vpack.c.b16 %v417, %v414
    %v457 = vpack.c.b16 %v418, %v415
    %v458 = vpack.c.b16 %v422, %v419
    %v459 = vpack.c.b16 %v423, %v420
    %v460 = vpack.c.b16 %v424, %v421
    %v461 = vpack.c.b16 %v428, %v425
    %v462 = vpack.c.b16 %v429, %v426
    %v463 = vpack.c.b16 %v430, %v427
    %v464 = vpack.c.b16 %v434, %v431
    %v465 = vpack.c.b16 %v435, %v432
    %v466 = vpack.c.b16 %v436, %v433
    %v467 = vpack.c.b16 %v440, %v437
    %v468 = vpack.c.b16 %v441, %v438
    %v469 = vpack.c.b16 %v442, %v439
    %v470 = vpack.c.b16 %v446, %v443
    %v471 = vpack.c.b16 %v447, %v444
    %v472 = vpack.c.b16 %v448, %v445
    %497 = vmatprep.subr.bf16.mxu0 %v450
    %498 = vmatpush1.bf16.msra.mxu0 %v449
    %499 = vmatprep.subr.bf16.mxu0 %v453
    %500 = vmatpush1.bf16.msra.mxu0 %v452
    %501 = vmatprep.subr.bf16.mxu0 %v456
    %502 = vmatpush1.bf16.msra.mxu0 %v455
    %503 = vmatprep.subr.bf16.mxu0 %v459
    %504 = vmatpush1.bf16.msra.mxu0 %v458
    %505 = vmatprep.subr.bf16.mxu0 %v462
    %506 = vmatpush1.bf16.msra.mxu0 %v461
    %507 = vmatprep.subr.bf16.mxu0 %v465
    %508 = vmatpush1.bf16.msra.mxu0 %v464
    %509 = vmatprep.subr.bf16.mxu0 %v468
    %510 = vmatpush1.bf16.msra.mxu0 %v467
    %511 = vmatprep.subr.bf16.mxu0 %v471
    %512 = vmatpush1.bf16.msra.mxu0 %v470
    %513 = vmatprep.subr.bf16.mxu0 0
    %514 = vmatpush1.bf16.msra.mxu0 0
    %515 = vmatprep.subr.bf16.mxu0 0
    %516 = vmatpush1.bf16.msra.mxu0 0
    %517 = vmatprep.subr.bf16.mxu0 0
    %518 = vmatpush1.bf16.msra.mxu0 0
    %519 = vmatprep.subr.bf16.mxu0 0
    %520 = vmatpush1.bf16.msra.mxu0 0
    %521 = vmatprep.subr.bf16.mxu0 0
    %522 = vmatpush1.bf16.msra.mxu0 0
    %523 = vmatprep.subr.bf16.mxu0 0
    %524 = vmatpush1.bf16.msra.mxu0 0
    %525 = vmatprep.subr.bf16.mxu0 0
    %526 = vmatpush1.bf16.msra.mxu0 0
    %527 = vmatprep.subr.bf16.mxu0 0
    %528 = vmatpush1.bf16.msra.mxu0 0
    %529 = vmatprep.mubr.bf16.mxu0 0
    %530 = vmatmul.mubr.bf16.gmra.mrb[0].mxu0 %v336
    %v531 = vpop.f32.mrb[0].mxu0
    %v532 = vadd.f32 0.0, %v531
    %v533 = vpop.f32.mrb[0].mxu0
    %v534 = vadd.f32 0.0, %v533
    %v535 = vpop.f32.mrb[0].mxu0
    %v536 = vpop.f32.mrb[0].mxu0
    %537 = vdwg.mxu0
    %538 = vmatprep.subr.bf16.mxu0 0
    %539 = vmatpush1.bf16.msra.mxu0 %v451
    %540 = vmatprep.subr.bf16.mxu0 0
    %541 = vmatpush1.bf16.msra.mxu0 %v454
    %542 = vmatprep.subr.bf16.mxu0 0
    %543 = vmatpush1.bf16.msra.mxu0 %v457
    %544 = vmatprep.subr.bf16.mxu0 0
    %545 = vmatpush1.bf16.msra.mxu0 %v460
    %546 = vmatprep.subr.bf16.mxu0 0
    %547 = vmatpush1.bf16.msra.mxu0 %v463
    %548 = vmatprep.subr.bf16.mxu0 0
    %549 = vmatpush1.bf16.msra.mxu0 %v466
    %550 = vmatprep.subr.bf16.mxu0 0
    %551 = vmatpush1.bf16.msra.mxu0 %v469
    %552 = vmatprep.subr.bf16.mxu0 0
    %553 = vmatpush1.bf16.msra.mxu0 %v472
    %554 = vmatprep.subr.bf16.mxu0 0
    %555 = vmatpush1.bf16.msra.mxu0 0
    %556 = vmatprep.subr.bf16.mxu0 0
    %557 = vmatpush1.bf16.msra.mxu0 0
    %558 = vmatprep.subr.bf16.mxu0 0
    %559 = vmatpush1.bf16.msra.mxu0 0
    %560 = vmatprep.subr.bf16.mxu0 0
    %561 = vmatpush1.bf16.msra.mxu0 0
    %562 = vmatprep.subr.bf16.mxu0 0
    %563 = vmatpush1.bf16.msra.mxu0 0
    %564 = vmatprep.subr.bf16.mxu0 0
    %565 = vmatpush1.bf16.msra.mxu0 0
    %566 = vmatprep.subr.bf16.mxu0 0
    %567 = vmatpush1.bf16.msra.mxu0 0
    %568 = vmatprep.subr.bf16.mxu0 0
    %569 = vmatpush1.bf16.msra.mxu0 0
    %570 = vmatprep.mubr.bf16.mxu0 0
    %571 = vmatmul.mubr.bf16.gmra.mrb[0].mxu0 %v336
    %v572 = vpop.f32.mrb[0].mxu0
    %v573 = vadd.f32 0.0, %v572
    %v574 = vpop.f32.mrb[0].mxu0
    %v575 = vpop.f32.mrb[0].mxu0
    %v576 = vpop.f32.mrb[0].mxu0
    %577 = vdwg.mxu0
    %v578 = vadd.f32 %v290, %v532
    %v579 = vxor.u32 %v578, 2147483648
    %v580 = vmul.f32 %v579, 1.442695
    %v581 = vpow.pop %v580
    %v582 = vadd.f32 %v581, 1.0
    %v583 = vrcp.pop %v582
    %v584 = vmul.f32 1.0, %v583
    %v585 = vadd.f32 %v292, %v534
    %v586 = vxor.u32 %v585, 2147483648
    %v587 = vmul.f32 %v586, 1.442695
    %v588 = vpow.pop %v587
    %v589 = vadd.f32 %v588, 1.0
    %v590 = vrcp.pop %v589
    %v591 = vmul.f32 1.0, %v590
    %v592 = vld [vmem:[%s5] sm:$0x1]
    %v594 = vlaneseq
    %v595 = vshrl.u32 %v594, 7
    %v596 = vsub.s32 0, %v595
    %v597 = vrot.slane %v592, %v596
    %v599 = vadd.f32 %v573, %v597
    %v600 = vmul.f32 %v584, %v599
    %v601 = vadd.f32 %v331, %v600
    %v602 = vtanh.pop %v601
    %v603 = vsub.f32 %v77, %v602
    %v604 = vmul.f32 %v591, %v603
    %v605 = vadd.f32 %v602, %v604
    %606 = vst [vmem:[#allocation10] sm:$0xff] %v605
    // Predicated region
    $region42: #{tpu_custom_call.1} parent=1 // pred_check
      _
    $region43: #{tpu_custom_call.1} parent=1 // pred_check_branch
      %608 = sbr.rel (0) target = $region45
    $region44: #{tpu_custom_call.1} parent=1 // pred_region
      %s610 = ssub.s32 128, 128
      %611 = vsyncadd [#allocation4], %s610
      %s613 = sshll.u32 [#allocation10], 4
      %s614 = int_to_ptr.vmem [resolvable:$true] %s613
      %616 = dma.vmem_to_hbm [thread:$0]  %s614, 128, %s6, [#allocation4]
    $region45: #{tpu_custom_call.1} parent=1 // pred_fallthru
      _
    // Predicated region
    $region46: #{tpu_custom_call.1} parent=1 // pred_check
      _
    $region47: #{tpu_custom_call.1} parent=1 // pred_check_branch
      %618 = sbr.rel (0) target = $region49
    $region48: #{tpu_custom_call.1} parent=1 // pred_region
      %619 = dma.done [#allocation4], 128
    $region49: #{tpu_custom_call.1} parent=1 // pred_fallthru
      _
    %620 = vsyncpa [#allocation3], 1
    %621 = vsyncpa [#allocation6], 1
    %622 = vsyncpa [#allocation9], 1
    %623 = vsyncpa [#allocation4], 1

// kernel: tpu_custom_call.1
$region0: #{tpu_custom_call.1}
  #allocation0 [shape = 'u32[]', space=smem, size = 0x4, offset = 0x4, fixed_abs, tag = 'smem constant byte address 0x4 - core index']
  #allocation1 [shape = 'u32[144,128]{1,0:T(1,128)}', space=vmem, size = 0x12000, scoped, tag = 'internal scratch']
  %s0 = inlined_call_operand.hbm [shape: bf16[8,128], index: 0, kind: input, shape index: {}]
  %s1 = inlined_call_operand.hbm [shape: f32[8,128], index: 1, kind: input, shape index: {}]
  %s2 = inlined_call_operand.hbm [shape: bf16[128,384], index: 2, kind: input, shape index: {}]
  %s3 = inlined_call_operand.hbm [shape: bf16[128,384], index: 3, kind: input, shape index: {}]
  %s4 = inlined_call_operand.vmem [shape: f32[1,384], index: 4, kind: input, shape index: {}]
  %s5 = inlined_call_operand.vmem [shape: f32[1,128], index: 5, kind: input, shape index: {}]
  %s6 = inlined_call_operand.hbm [shape: f32[8,128], index: 6, kind: output, shape index: {}]
  %s7 = sld [smem:[#allocation0]]
  $region50: #{tpu_custom_call.1} parent=0
    _
  %s9 = ssub.s32 1, %s7
  %s10 = scalar_select 0, %s9, %s7
  $region1: #{tpu_custom_call.1} parent=0
    #allocation2 [shape = 'u8[2048]{0}', space=vmem, size = 0x800, scoped, tag = 'input window, operand 0, single buffered']
    #allocation3 [shape = 's32[1]{0}', space=sflag, size = 0x4, scoped, tag = 'scoped memory for tpu_custom_call.1']
    #allocation4 [shape = 's32[1]{0}', space=sflag, size = 0x4, scoped, tag = 'scoped memory for tpu_custom_call.1']
    #allocation5 [shape = 'u8[4096]{0}', space=vmem, size = 0x1000, scoped, tag = 'input window, operand 1, single buffered']
    #allocation6 [shape = 's32[1]{0}', space=sflag, size = 0x4, scoped, tag = 'scoped memory for tpu_custom_call.1']
    #allocation7 [shape = 'u8[98304]{0}', space=vmem, size = 0x18000, scoped, tag = 'input window, operand 2, single buffered']
    #allocation8 [shape = 'u8[98304]{0}', space=vmem, size = 0x18000, scoped, tag = 'input window, operand 3, single buffered']
    #allocation9 [shape = 's32[1]{0}', space=sflag, size = 0x4, scoped, tag = 'scoped memory for tpu_custom_call.1']
    #allocation10 [shape = 'u8[4096]{0}', space=vmem, size = 0x1000, scoped, tag = 'output window, operand 0, single buffered']
    %11 = vsyncpa [#allocation3], 0
    %12 = vsyncpa [#allocation6], 0
    %13 = vsyncpa [#allocation9], 0
    %14 = vsyncpa [#allocation4], 0
    // Predicated region
    $region2: #{tpu_custom_call.1} parent=1 // pred_check
      _
    $region3: #{tpu_custom_call.1} parent=1 // pred_check_branch
      %16 = sbr.rel (0) target = $region5
    $region4: #{tpu_custom_call.1} parent=1 // pred_region
      %s18 = ssub.s32 64, 64
      %19 = vsyncadd [#allocation3], %s18
      %s21 = sshll.u32 [#allocation2], 4
      %s22 = int_to_ptr.vmem [resolvable:$true] %s21
      %24 = dma.hbm_to_vmem [thread:$0]  %s0, 64, %s22, [#allocation3]
    $region5: #{tpu_custom_call.1} parent=1 // pred_fallthru
      _
    // Predicated region
    $region6: #{tpu_custom_call.1} parent=1 // pred_check
      _
    $region7: #{tpu_custom_call.1} parent=1 // pred_check_branch
      %26 = sbr.rel (0) target = $region9
    $region8: #{tpu_custom_call.1} parent=1 // pred_region
      %s28 = ssub.s32 128, 128
      %29 = vsyncadd [#allocation6], %s28
      %s31 = sshll.u32 [#allocation5], 4
      %s32 = int_to_ptr.vmem [resolvable:$true] %s31
      %34 = dma.hbm_to_vmem [thread:$0]  %s1, 128, %s32, [#allocation6]
    $region9: #{tpu_custom_call.1} parent=1 // pred_fallthru
      _
    // Predicated region
    $region10: #{tpu_custom_call.1} parent=1 // pred_check
      _
    $region11: #{tpu_custom_call.1} parent=1 // pred_check_branch
      %36 = sbr.rel (0) target = $region13
    $region12: #{tpu_custom_call.1} parent=1 // pred_region
      %s38 = ssub.s32 3072, 3072
      %39 = vsyncadd [#allocation6], %s38
      %s40 = sshll.u32 [#allocation7], 4
      %s41 = int_to_ptr.vmem [resolvable:$true] %s40
      %46 = dma.hbm_to_vmem [thread:$0]  %s2, 3072, %s41, [#allocation6], 192, 192, 12
    $region13: #{tpu_custom_call.1} parent=1 // pred_fallthru
      _
    // Predicated region
    $region14: #{tpu_custom_call.1} parent=1 // pred_check
      _
    $region15: #{tpu_custom_call.1} parent=1 // pred_check_branch
      %48 = sbr.rel (0) target = $region17
    $region16: #{tpu_custom_call.1} parent=1 // pred_region
      %s50 = ssub.s32 3072, 3072
      %51 = vsyncadd [#allocation9], %s50
      %s52 = sshll.u32 [#allocation8], 4
      %s53 = int_to_ptr.vmem [resolvable:$true] %s52
      %58 = dma.hbm_to_vmem [thread:$0]  %s3, 3072, %s53, [#allocation9], 192, 192, 12
    $region17: #{tpu_custom_call.1} parent=1 // pred_fallthru
      _
    // Predicated region
    $region18: #{tpu_custom_call.1} parent=1 // pred_check
      _
    $region19: #{tpu_custom_call.1} parent=1 // pred_check_branch
      %60 = sbr.rel (0) target = $region21
    $region20: #{tpu_custom_call.1} parent=1 // pred_region
      _
    $region21: #{tpu_custom_call.1} parent=1 // pred_fallthru
      _
    // Predicated region
    $region22: #{tpu_custom_call.1} parent=1 // pred_check
      _
    $region23: #{tpu_custom_call.1} parent=1 // pred_check_branch
      %62 = sbr.rel (0) target = $region25
    $region24: #{tpu_custom_call.1} parent=1 // pred_region
      _
    $region25: #{tpu_custom_call.1} parent=1 // pred_fallthru
      _
    // Predicated region
    $region26: #{tpu_custom_call.1} parent=1 // pred_check
      _
    $region27: #{tpu_custom_call.1} parent=1 // pred_check_branch
      %64 = sbr.rel (0) target = $region29
    $region28: #{tpu_custom_call.1} parent=1 // pred_region
      %65 = dma.done [#allocation3], 64
    $region29: #{tpu_custom_call.1} parent=1 // pred_fallthru
      _
    // Predicated region
    $region30: #{tpu_custom_call.1} parent=1 // pred_check
      _
    $region31: #{tpu_custom_call.1} parent=1 // pred_check_branch
      %67 = sbr.rel (0) target = $region33
    $region32: #{tpu_custom_call.1} parent=1 // pred_region
      %68 = dma.done [#allocation6], 128
    $region33: #{tpu_custom_call.1} parent=1 // pred_fallthru
      _
    // Predicated region
    $region34: #{tpu_custom_call.1} parent=1 // pred_check
      _
    $region35: #{tpu_custom_call.1} parent=1 // pred_check_branch
      %70 = sbr.rel (0) target = $region37
    $region36: #{tpu_custom_call.1} parent=1 // pred_region
      %71 = dma.done [#allocation6], 3072
    $region37: #{tpu_custom_call.1} parent=1 // pred_fallthru
      _
    // Predicated region
    $region38: #{tpu_custom_call.1} parent=1 // pred_check
      _
    $region39: #{tpu_custom_call.1} parent=1 // pred_check_branch
      %73 = sbr.rel (0) target = $region41
    $region40: #{tpu_custom_call.1} parent=1 // pred_region
      %74 = dma.done [#allocation9], 3072
    $region41: #{tpu_custom_call.1} parent=1 // pred_fallthru
      _
    %v76 = vld [vmem:[#allocation2] sm:$0xf]
    %v77 = vld [vmem:[#allocation5] sm:$0xff]
    %v78 = vld [vmem:[#allocation7] sm:$0xff]
    %v79 = vld [vmem:[#allocation7 + $0x8] sm:$0xf]
    %v80 = vld [vmem:[#allocation7 + $0xc] sm:$0xff]
    %v81 = vld [vmem:[#allocation7 + $0x14] sm:$0xf]
    %v82 = vld [vmem:[#allocation7 + $0x18] sm:$0xff]
    %v83 = vld [vmem:[#allocation7 + $0x20] sm:$0xf]
    %v84 = vld [vmem:[#allocation7 + $0x24] sm:$0xff]
    %v85 = vld [vmem:[#allocation7 + $0x2c] sm:$0xf]
    %v86 = vld [vmem:[#allocation7 + $0x30] sm:$0xff]
    %v87 = vld [vmem:[#allocation7 + $0x38] sm:$0xf]
    %v88 = vld [vmem:[#allocation7 + $0x3c] sm:$0xff]
    %v89 = vld [vmem:[#allocation7 + $0x44] sm:$0xf]
    %v90 = vld [vmem:[#allocation7 + $0x48] sm:$0xff]
    %v91 = vld [vmem:[#allocation7 + $0x50] sm:$0xf]
    %v92 = vld [vmem:[#allocation7 + $0x54] sm:$0xff]
    %v93 = vld [vmem:[#allocation7 + $0x5c] sm:$0xf]
    %v94 = vld [vmem:[#allocation7 + $0x60] sm:$0xff]
    %v95 = vld [vmem:[#allocation7 + $0x68] sm:$0xf]
    %v96 = vld [vmem:[#allocation7 + $0x6c] sm:$0xff]
    %v97 = vld [vmem:[#allocation7 + $0x74] sm:$0xf]
    %v98 = vld [vmem:[#allocation7 + $0x78] sm:$0xff]
    %v99 = vld [vmem:[#allocation7 + $0x80] sm:$0xf]
    %v100 = vld [vmem:[#allocation7 + $0x84] sm:$0xff]
    %v101 = vld [vmem:[#allocation7 + $0x8c] sm:$0xf]
    %v102 = vld [vmem:[#allocation7 + $0x90] sm:$0xff]
    %v103 = vld [vmem:[#allocation7 + $0x98] sm:$0xf]
    %v104 = vld [vmem:[#allocation7 + $0x9c] sm:$0xff]
    %v105 = vld [vmem:[#allocation7 + $0xa4] sm:$0xf]
    %v106 = vld [vmem:[#allocation7 + $0xa8] sm:$0xff]
    %v107 = vld [vmem:[#allocation7 + $0xb0] sm:$0xf]
    %v108 = vld [vmem:[#allocation7 + $0xb4] sm:$0xff]
    %v109 = vld [vmem:[#allocation7 + $0xbc] sm:$0xf]
    %v110 = vld [vmem:[%s4] sm:$0x7]
    %v112 = vlaneseq
    %v113 = vshrl.u32 %v112, 7
    %v114 = vsub.s32 0, %v113
    %v115 = vrot.slane %v110, %v114
    %v116 = vlaneseq
    %v117 = vshrl.u32 %v116, 7
    %v118 = vsub.s32 1, %v117
    %v119 = vrot.slane %v110, %v118
    %v120 = vlaneseq
    %v121 = vshrl.u32 %v120, 7
    %v122 = vsub.s32 2, %v121
    %v123 = vrot.slane %v110, %v122
    %v159 = vunpack.c.l.b16 %v78
    %v160 = vunpack.c.h.b16 %v78
    %v161 = vunpack.c.l.b16 %v79
    %v162 = vunpack.c.l.b16 %v80
    %v163 = vunpack.c.h.b16 %v80
    %v164 = vunpack.c.l.b16 %v81
    %v165 = vunpack.c.l.b16 %v82
    %v166 = vunpack.c.h.b16 %v82
    %v167 = vunpack.c.l.b16 %v83
    %v168 = vunpack.c.l.b16 %v84
    %v169 = vunpack.c.h.b16 %v84
    %v170 = vunpack.c.l.b16 %v85
    %v171 = vunpack.c.l.b16 %v86
    %v172 = vunpack.c.h.b16 %v86
    %v173 = vunpack.c.l.b16 %v87
    %v174 = vunpack.c.l.b16 %v88
    %v175 = vunpack.c.h.b16 %v88
    %v176 = vunpack.c.l.b16 %v89
    %v177 = vunpack.c.l.b16 %v90
    %v178 = vunpack.c.h.b16 %v90
    %v179 = vunpack.c.l.b16 %v91
    %v180 = vunpack.c.l.b16 %v92
    %v181 = vunpack.c.h.b16 %v92
    %v182 = vunpack.c.l.b16 %v93
    %v183 = vunpack.c.l.b16 %v94
    %v184 = vunpack.c.h.b16 %v94
    %v185 = vunpack.c.l.b16 %v95
    %v186 = vunpack.c.l.b16 %v96
    %v187 = vunpack.c.h.b16 %v96
    %v188 = vunpack.c.l.b16 %v97
    %v189 = vunpack.c.l.b16 %v98
    %v190 = vunpack.c.h.b16 %v98
    %v191 = vunpack.c.l.b16 %v99
    %v192 = vunpack.c.l.b16 %v100
    %v193 = vunpack.c.h.b16 %v100
    %v194 = vunpack.c.l.b16 %v101
    %v195 = vunpack.c.l.b16 %v102
    %v196 = vunpack.c.h.b16 %v102
    %v197 = vunpack.c.l.b16 %v103
    %v198 = vunpack.c.l.b16 %v104
    %v199 = vunpack.c.h.b16 %v104
    %v200 = vunpack.c.l.b16 %v105
    %v201 = vunpack.c.l.b16 %v106
    %v202 = vunpack.c.h.b16 %v106
    %v203 = vunpack.c.l.b16 %v107
    %v204 = vunpack.c.l.b16 %v108
    %v205 = vunpack.c.h.b16 %v108
    %v206 = vunpack.c.l.b16 %v109
    %v207 = vpack.c.b16 %v162, %v159
    %v208 = vpack.c.b16 %v163, %v160
    %v209 = vpack.c.b16 %v164, %v161
    %v210 = vpack.c.b16 %v168, %v165
    %v211 = vpack.c.b16 %v169, %v166
    %v212 = vpack.c.b16 %v170, %v167
    %v213 = vpack.c.b16 %v174, %v171
    %v214 = vpack.c.b16 %v175, %v172
    %v215 = vpack.c.b16 %v176, %v173
    %v216 = vpack.c.b16 %v180, %v177
    %v217 = vpack.c.b16 %v181, %v178
    %v218 = vpack.c.b16 %v182, %v179
    %v219 = vpack.c.b16 %v186, %v183
    %v220 = vpack.c.b16 %v187, %v184
    %v221 = vpack.c.b16 %v188, %v185
    %v222 = vpack.c.b16 %v192, %v189
    %v223 = vpack.c.b16 %v193, %v190
    %v224 = vpack.c.b16 %v194, %v191
    %v225 = vpack.c.b16 %v198, %v195
    %v226 = vpack.c.b16 %v199, %v196
    %v227 = vpack.c.b16 %v200, %v197
    %v228 = vpack.c.b16 %v204, %v201
    %v229 = vpack.c.b16 %v205, %v202
    %v230 = vpack.c.b16 %v206, %v203
    %255 = vmatprep.subr.bf16.mxu0 %v208
    %256 = vmatpush1.bf16.msra.mxu0 %v207
    %257 = vmatprep.subr.bf16.mxu0 %v211
    %258 = vmatpush1.bf16.msra.mxu0 %v210
    %259 = vmatprep.subr.bf16.mxu0 %v214
    %260 = vmatpush1.bf16.msra.mxu0 %v213
    %261 = vmatprep.subr.bf16.mxu0 %v217
    %262 = vmatpush1.bf16.msra.mxu0 %v216
    %263 = vmatprep.subr.bf16.mxu0 %v220
    %264 = vmatpush1.bf16.msra.mxu0 %v219
    %265 = vmatprep.subr.bf16.mxu0 %v223
    %266 = vmatpush1.bf16.msra.mxu0 %v222
    %267 = vmatprep.subr.bf16.mxu0 %v226
    %268 = vmatpush1.bf16.msra.mxu0 %v225
    %269 = vmatprep.subr.bf16.mxu0 %v229
    %270 = vmatpush1.bf16.msra.mxu0 %v228
    %271 = vmatprep.subr.bf16.mxu0 0
    %272 = vmatpush1.bf16.msra.mxu0 0
    %273 = vmatprep.subr.bf16.mxu0 0
    %274 = vmatpush1.bf16.msra.mxu0 0
    %275 = vmatprep.subr.bf16.mxu0 0
    %276 = vmatpush1.bf16.msra.mxu0 0
    %277 = vmatprep.subr.bf16.mxu0 0
    %278 = vmatpush1.bf16.msra.mxu0 0
    %279 = vmatprep.subr.bf16.mxu0 0
    %280 = vmatpush1.bf16.msra.mxu0 0
    %281 = vmatprep.subr.bf16.mxu0 0
    %282 = vmatpush1.bf16.msra.mxu0 0
    %283 = vmatprep.subr.bf16.mxu0 0
    %284 = vmatpush1.bf16.msra.mxu0 0
    %285 = vmatprep.subr.bf16.mxu0 0
    %286 = vmatpush1.bf16.msra.mxu0 0
    %287 = vmatprep.mubr.bf16.mxu0 0
    %288 = vmatmul.mubr.bf16.gmra.mrb[0].mxu0 %v76
    %v289 = vpop.f32.mrb[0].mxu0
    %v290 = vadd.f32 %v115, %v289
    %v291 = vpop.f32.mrb[0].mxu0
    %v292 = vadd.f32 %v119, %v291
    %v293 = vpop.f32.mrb[0].mxu0
    %v294 = vpop.f32.mrb[0].mxu0
    %295 = vdwg.mxu0
    %296 = vmatprep.subr.bf16.mxu0 0
    %297 = vmatpush1.bf16.msra.mxu0 %v209
    %298 = vmatprep.subr.bf16.mxu0 0
    %299 = vmatpush1.bf16.msra.mxu0 %v212
    %300 = vmatprep.subr.bf16.mxu0 0
    %301 = vmatpush1.bf16.msra.mxu0 %v215
    %302 = vmatprep.subr.bf16.mxu0 0
    %303 = vmatpush1.bf16.msra.mxu0 %v218
    %304 = vmatprep.subr.bf16.mxu0 0
    %305 = vmatpush1.bf16.msra.mxu0 %v221
    %306 = vmatprep.subr.bf16.mxu0 0
    %307 = vmatpush1.bf16.msra.mxu0 %v224
    %308 = vmatprep.subr.bf16.mxu0 0
    %309 = vmatpush1.bf16.msra.mxu0 %v227
    %310 = vmatprep.subr.bf16.mxu0 0
    %311 = vmatpush1.bf16.msra.mxu0 %v230
    %312 = vmatprep.subr.bf16.mxu0 0
    %313 = vmatpush1.bf16.msra.mxu0 0
    %314 = vmatprep.subr.bf16.mxu0 0
    %315 = vmatpush1.bf16.msra.mxu0 0
    %316 = vmatprep.subr.bf16.mxu0 0
    %317 = vmatpush1.bf16.msra.mxu0 0
    %318 = vmatprep.subr.bf16.mxu0 0
    %319 = vmatpush1.bf16.msra.mxu0 0
    %320 = vmatprep.subr.bf16.mxu0 0
    %321 = vmatpush1.bf16.msra.mxu0 0
    %322 = vmatprep.subr.bf16.mxu0 0
    %323 = vmatpush1.bf16.msra.mxu0 0
    %324 = vmatprep.subr.bf16.mxu0 0
    %325 = vmatpush1.bf16.msra.mxu0 0
    %326 = vmatprep.subr.bf16.mxu0 0
    %327 = vmatpush1.bf16.msra.mxu0 0
    %328 = vmatprep.mubr.bf16.mxu0 0
    %329 = vmatmul.mubr.bf16.gmra.mrb[0].mxu0 %v76
    %v330 = vpop.f32.mrb[0].mxu0
    %v331 = vadd.f32 %v123, %v330
    %v332 = vpop.f32.mrb[0].mxu0
    %v333 = vpop.f32.mrb[0].mxu0
    %v334 = vpop.f32.mrb[0].mxu0
    %335 = vdwg.mxu0
    %v336 = vpack.c.bf16 %v77, %v77
    %v337 = vld [vmem:[#allocation8] sm:$0xff]
    %v338 = vld [vmem:[#allocation8 + $0x8] sm:$0xf]
    %v339 = vld [vmem:[#allocation8 + $0xc] sm:$0xff]
    %v340 = vld [vmem:[#allocation8 + $0x14] sm:$0xf]
    %v341 = vld [vmem:[#allocation8 + $0x18] sm:$0xff]
    %v342 = vld [vmem:[#allocation8 + $0x20] sm:$0xf]
    %v343 = vld [vmem:[#allocation8 + $0x24] sm:$0xff]
    %v344 = vld [vmem:[#allocation8 + $0x2c] sm:$0xf]
    %v345 = vld [vmem:[#allocation8 + $0x30] sm:$0xff]
    %v346 = vld [vmem:[#allocation8 + $0x38] sm:$0xf]
    %v347 = vld [vmem:[#allocation8 + $0x3c] sm:$0xff]
    %v348 = vld [vmem:[#allocation8 + $0x44] sm:$0xf]
    %v349 = vld [vmem:[#allocation8 + $0x48] sm:$0xff]
    %v350 = vld [vmem:[#allocation8 + $0x50] sm:$0xf]
    %v351 = vld [vmem:[#allocation8 + $0x54] sm:$0xff]
    %v352 = vld [vmem:[#allocation8 + $0x5c] sm:$0xf]
    %v353 = vld [vmem:[#allocation8 + $0x60] sm:$0xff]
    %v354 = vld [vmem:[#allocation8 + $0x68] sm:$0xf]
    %v355 = vld [vmem:[#allocation8 + $0x6c] sm:$0xff]
    %v356 = vld [vmem:[#allocation8 + $0x74] sm:$0xf]
    %v357 = vld [vmem:[#allocation8 + $0x78] sm:$0xff]
    %v358 = vld [vmem:[#allocation8 + $0x80] sm:$0xf]
    %v359 = vld [vmem:[#allocation8 + $0x84] sm:$0xff]
    %v360 = vld [vmem:[#allocation8 + $0x8c] sm:$0xf]
    %v361 = vld [vmem:[#allocation8 + $0x90] sm:$0xff]
    %v362 = vld [vmem:[#allocation8 + $0x98] sm:$0xf]
    %v363 = vld [vmem:[#allocation8 + $0x9c] sm:$0xff]
    %v364 = vld [vmem:[#allocation8 + $0xa4] sm:$0xf]
    %v365 = vld [vmem:[#allocation8 + $0xa8] sm:$0xff]
    %v366 = vld [vmem:[#allocation8 + $0xb0] sm:$0xf]
    %v367 = vld [vmem:[#allocation8 + $0xb4] sm:$0xff]
    %v368 = vld [vmem:[#allocation8 + $0xbc] sm:$0xf]
    %v401 = vunpack.c.l.b16 %v337
    %v402 = vunpack.c.h.b16 %v337
    %v403 = vunpack.c.l.b16 %v338
    %v404 = vunpack.c.l.b16 %v339
    %v405 = vunpack.c.h.b16 %v339
    %v406 = vunpack.c.l.b16 %v340
    %v407 = vunpack.c.l.b16 %v341
    %v408 = vunpack.c.h.b16 %v341
    %v409 = vunpack.c.l.b16 %v342
    %v410 = vunpack.c.l.b16 %v343
    %v411 = vunpack.c.h.b16 %v343
    %v412 = vunpack.c.l.b16 %v344
    %v413 = vunpack.c.l.b16 %v345
    %v414 = vunpack.c.h.b16 %v345
    %v415 = vunpack.c.l.b16 %v346
    %v416 = vunpack.c.l.b16 %v347
    %v417 = vunpack.c.h.b16 %v347
    %v418 = vunpack.c.l.b16 %v348
    %v419 = vunpack.c.l.b16 %v349
    %v420 = vunpack.c.h.b16 %v349
    %v421 = vunpack.c.l.b16 %v350
    %v422 = vunpack.c.l.b16 %v351
    %v423 = vunpack.c.h.b16 %v351
    %v424 = vunpack.c.l.b16 %v352
    %v425 = vunpack.c.l.b16 %v353
    %v426 = vunpack.c.h.b16 %v353
    %v427 = vunpack.c.l.b16 %v354
    %v428 = vunpack.c.l.b16 %v355
    %v429 = vunpack.c.h.b16 %v355
    %v430 = vunpack.c.l.b16 %v356
    %v431 = vunpack.c.l.b16 %v357
    %v432 = vunpack.c.h.b16 %v357
    %v433 = vunpack.c.l.b16 %v358
    %v434 = vunpack.c.l.b16 %v359
    %v435 = vunpack.c.h.b16 %v359
    %v436 = vunpack.c.l.b16 %v360
    %v437 = vunpack.c.l.b16 %v361
    %v438 = vunpack.c.h.b16 %v361
    %v439 = vunpack.c.l.b16 %v362
    %v440 = vunpack.c.l.b16 %v363
    %v441 = vunpack.c.h.b16 %v363
    %v442 = vunpack.c.l.b16 %v364
    %v443 = vunpack.c.l.b16 %v365
    %v444 = vunpack.c.h.b16 %v365
    %v445 = vunpack.c.l.b16 %v366
    %v446 = vunpack.c.l.b16 %v367
    %v447 = vunpack.c.h.b16 %v367
    %v448 = vunpack.c.l.b16 %v368
    %v449 = vpack.c.b16 %v404, %v401
    %v450 = vpack.c.b16 %v405, %v402
    %v451 = vpack.c.b16 %v406, %v403
    %v452 = vpack.c.b16 %v410, %v407
    %v453 = vpack.c.b16 %v411, %v408
    %v454 = vpack.c.b16 %v412, %v409
    %v455 = vpack.c.b16 %v416, %v413
    %v456 = vpack.c.b16 %v417, %v414
    %v457 = vpack.c.b16 %v418, %v415
    %v458 = vpack.c.b16 %v422, %v419
    %v459 = vpack.c.b16 %v423, %v420
    %v460 = vpack.c.b16 %v424, %v421
    %v461 = vpack.c.b16 %v428, %v425
    %v462 = vpack.c.b16 %v429, %v426
    %v463 = vpack.c.b16 %v430, %v427
    %v464 = vpack.c.b16 %v434, %v431
    %v465 = vpack.c.b16 %v435, %v432
    %v466 = vpack.c.b16 %v436, %v433
    %v467 = vpack.c.b16 %v440, %v437
    %v468 = vpack.c.b16 %v441, %v438
    %v469 = vpack.c.b16 %v442, %v439
    %v470 = vpack.c.b16 %v446, %v443
    %v471 = vpack.c.b16 %v447, %v444
    %v472 = vpack.c.b16 %v448, %v445
    %497 = vmatprep.subr.bf16.mxu0 %v450
    %498 = vmatpush1.bf16.msra.mxu0 %v449
    %499 = vmatprep.subr.bf16.mxu0 %v453
    %500 = vmatpush1.bf16.msra.mxu0 %v452
    %501 = vmatprep.subr.bf16.mxu0 %v456
    %502 = vmatpush1.bf16.msra.mxu0 %v455
    %503 = vmatprep.subr.bf16.mxu0 %v459
    %504 = vmatpush1.bf16.msra.mxu0 %v458
    %505 = vmatprep.subr.bf16.mxu0 %v462
    %506 = vmatpush1.bf16.msra.mxu0 %v461
    %507 = vmatprep.subr.bf16.mxu0 %v465
    %508 = vmatpush1.bf16.msra.mxu0 %v464
    %509 = vmatprep.subr.bf16.mxu0 %v468
    %510 = vmatpush1.bf16.msra.mxu0 %v467
    %511 = vmatprep.subr.bf16.mxu0 %v471
    %512 = vmatpush1.bf16.msra.mxu0 %v470
    %513 = vmatprep.subr.bf16.mxu0 0
    %514 = vmatpush1.bf16.msra.mxu0 0
    %515 = vmatprep.subr.bf16.mxu0 0
    %516 = vmatpush1.bf16.msra.mxu0 0
    %517 = vmatprep.subr.bf16.mxu0 0
    %518 = vmatpush1.bf16.msra.mxu0 0
    %519 = vmatprep.subr.bf16.mxu0 0
    %520 = vmatpush1.bf16.msra.mxu0 0
    %521 = vmatprep.subr.bf16.mxu0 0
    %522 = vmatpush1.bf16.msra.mxu0 0
    %523 = vmatprep.subr.bf16.mxu0 0
    %524 = vmatpush1.bf16.msra.mxu0 0
    %525 = vmatprep.subr.bf16.mxu0 0
    %526 = vmatpush1.bf16.msra.mxu0 0
    %527 = vmatprep.subr.bf16.mxu0 0
    %528 = vmatpush1.bf16.msra.mxu0 0
    %529 = vmatprep.mubr.bf16.mxu0 0
    %530 = vmatmul.mubr.bf16.gmra.mrb[0].mxu0 %v336
    %v531 = vpop.f32.mrb[0].mxu0
    %v532 = vadd.f32 0.0, %v531
    %v533 = vpop.f32.mrb[0].mxu0
    %v534 = vadd.f32 0.0, %v533
    %v535 = vpop.f32.mrb[0].mxu0
    %v536 = vpop.f32.mrb[0].mxu0
    %537 = vdwg.mxu0
    %538 = vmatprep.subr.bf16.mxu0 0
    %539 = vmatpush1.bf16.msra.mxu0 %v451
    %540 = vmatprep.subr.bf16.mxu0 0
    %541 = vmatpush1.bf16.msra.mxu0 %v454
    %542 = vmatprep.subr.bf16.mxu0 0
    %543 = vmatpush1.bf16.msra.mxu0 %v457
    %544 = vmatprep.subr.bf16.mxu0 0
    %545 = vmatpush1.bf16.msra.mxu0 %v460
    %546 = vmatprep.subr.bf16.mxu0 0
    %547 = vmatpush1.bf16.msra.mxu0 %v463
    %548 = vmatprep.subr.bf16.mxu0 0
    %549 = vmatpush1.bf16.msra.mxu0 %v466
    %550 = vmatprep.subr.bf16.mxu0 0
    %551 = vmatpush1.bf16.msra.mxu0 %v469
    %552 = vmatprep.subr.bf16.mxu0 0
    %553 = vmatpush1.bf16.msra.mxu0 %v472
    %554 = vmatprep.subr.bf16.mxu0 0
    %555 = vmatpush1.bf16.msra.mxu0 0
    %556 = vmatprep.subr.bf16.mxu0 0
    %557 = vmatpush1.bf16.msra.mxu0 0
    %558 = vmatprep.subr.bf16.mxu0 0
    %559 = vmatpush1.bf16.msra.mxu0 0
    %560 = vmatprep.subr.bf16.mxu0 0
    %561 = vmatpush1.bf16.msra.mxu0 0
    %562 = vmatprep.subr.bf16.mxu0 0
    %563 = vmatpush1.bf16.msra.mxu0 0
    %564 = vmatprep.subr.bf16.mxu0 0
    %565 = vmatpush1.bf16.msra.mxu0 0
    %566 = vmatprep.subr.bf16.mxu0 0
    %567 = vmatpush1.bf16.msra.mxu0 0
    %568 = vmatprep.subr.bf16.mxu0 0
    %569 = vmatpush1.bf16.msra.mxu0 0
    %570 = vmatprep.mubr.bf16.mxu0 0
    %571 = vmatmul.mubr.bf16.gmra.mrb[0].mxu0 %v336
    %v572 = vpop.f32.mrb[0].mxu0
    %v573 = vadd.f32 0.0, %v572
    %v574 = vpop.f32.mrb[0].mxu0
    %v575 = vpop.f32.mrb[0].mxu0
    %v576 = vpop.f32.mrb[0].mxu0
    %577 = vdwg.mxu0
    %v578 = vadd.f32 %v290, %v532
    %v579 = vxor.u32 %v578, 2147483648
    %v580 = vmul.f32 %v579, 1.442695
    %v581 = vpow.pop %v580
    %v582 = vadd.f32 %v581, 1.0
    %v583 = vrcp.pop %v582
    %v584 = vmul.f32 1.0, %v583
    %v585 = vadd.f32 %v292, %v534
    %v586 = vxor.u32 %v585, 2147483648
    %v587 = vmul.f32 %v586, 1.442695
    %v588 = vpow.pop %v587
    %v589 = vadd.f32 %v588, 1.0
    %v590 = vrcp.pop %v589
    %v591 = vmul.f32 1.0, %v590
    %v592 = vld [vmem:[%s5] sm:$0x1]
    %v594 = vlaneseq
    %v595 = vshrl.u32 %v594, 7
    %v596 = vsub.s32 0, %v595
    %v597 = vrot.slane %v592, %v596
    %v599 = vadd.f32 %v573, %v597
    %v600 = vmul.f32 %v584, %v599
    %v601 = vadd.f32 %v331, %v600
    %v602 = vtanh.pop %v601
    %v603 = vsub.f32 %v77, %v602
    %v604 = vmul.f32 %v591, %v603
    %v605 = vadd.f32 %v602, %v604
    %606 = vst [vmem:[#allocation10] sm:$0xff] %v605
    // Predicated region
    $region42: #{tpu_custom_call.1} parent=1 // pred_check
      _
    $region43: #{tpu_custom_call.1} parent=1 // pred_check_branch
      %608 = sbr.rel (0) target = $region45
    $region44: #{tpu_custom_call.1} parent=1 // pred_region
      %s610 = ssub.s32 128, 128
      %611 = vsyncadd [#allocation4], %s610
      %s613 = sshll.u32 [#allocation10], 4
      %s614 = int_to_ptr.vmem [resolvable:$true] %s613
      %616 = dma.vmem_to_hbm [thread:$0]  %s614, 128, %s6, [#allocation4]
    $region45: #{tpu_custom_call.1} parent=1 // pred_fallthru
      _
    // Predicated region
    $region46: #{tpu_custom_call.1} parent=1 // pred_check
      _
    $region47: #{tpu_custom_call.1} parent=1 // pred_check_branch
      %618 = sbr.rel (0) target = $region49
    $region48: #{tpu_custom_call.1} parent=1 // pred_region
      %619 = dma.done [#allocation4], 128
    $region49: #{tpu_custom_call.1} parent=1 // pred_fallthru
      _
    %620 = vsyncpa [#allocation3], 1
    %621 = vsyncpa [#allocation6], 1
    %622 = vsyncpa [#allocation9], 1
    %623 = vsyncpa [#allocation4], 1

</llo_original>
